<compile_context>
chip_gen: v7x
topology: tpu7x:2x2x1
jax: 0.10.0
libtpu: 0.0.40
codegen_flags: <defaults>
</compile_context>

<pallas_src>
import jax
import jax.numpy as jnp
from jax.experimental import pallas as pl
from jax.experimental.pallas import tpu as pltpu


def _double_conv_kernel(x_ref, a1_ref, b1_ref, a2_ref, b2_ref, o_ref):
    # x_ref : (1, H+4, W*Cin)   f32, rows zero-padded by 2 (combined row halo)
    # a1_ref: (3, W*Cin, W*Cout)  bf16 banded conv1 weights (one slab per ky)
    # b1_ref: (1, W*Cout)         f32 conv1 bias tiled across columns
    # a2_ref: (3, W*Cout, W*Cout) bf16 banded conv2 weights
    # b2_ref: (1, W*Cout)         f32 conv2 bias tiled across columns
    # o_ref : (1, H, W*Cout)      f32 lane-dense output
    img_h = o_ref.shape[1]
    r = img_h + 2                      # hidden rows incl. 1-row halo each side
    mxu = jnp.bfloat16

    xw = x_ref[0]                      # (H+4, W*Cin) f32

    # ---- Conv1: 3 banded MXU matmuls (kx taps + Cin folded into K).
    # Out-of-image column taps are absent from the band => zero padding in W.
    acc1 = jnp.dot(xw[0:r, :].astype(mxu), a1_ref[0],
                   preferred_element_type=jnp.float32)
    acc1 += jnp.dot(xw[1:1 + r, :].astype(mxu), a1_ref[1],
                    preferred_element_type=jnp.float32)
    acc1 += jnp.dot(xw[2:2 + r, :].astype(mxu), a1_ref[2],
                    preferred_element_type=jnp.float32)

    # Bias + ReLU, then zero the two out-of-image halo rows: that IS conv2's
    # row zero padding (columns never carry a halo in this layout).
    row = jax.lax.broadcasted_iota(jnp.int32, acc1.shape, 0)
    hid = jnp.where((row >= 1) & (row <= img_h),
                    jnp.maximum(acc1 + b1_ref[...], 0.0),
                    0.0)                                    # (H+2, W*Cout) f32

    # ---- Conv2: 3 banded MXU matmuls straight into the lane-dense output.
    acc2 = jnp.dot(hid[0:img_h, :].astype(mxu), a2_ref[0],
                   preferred_element_type=jnp.float32)
    acc2 += jnp.dot(hid[1:1 + img_h, :].astype(mxu), a2_ref[1],
                    preferred_element_type=jnp.float32)
    acc2 += jnp.dot(hid[2:2 + img_h, :].astype(mxu), a2_ref[2],
                    preferred_element_type=jnp.float32)

    o_ref[0] = jnp.maximum(acc2 + b2_ref[...], 0.0).astype(o_ref.dtype)


def _banded_weights(w, cin, cout, width):
    """(Cout, Cin, 3, 3) OIHW weights -> (3, width*cin, width*cout) band slabs.

    Slab ky multiplies the ky-row-shifted wide activation; kx taps and input
    channels are folded into the contraction dim:
        A[ky][q*cin + ci, j*cout + co] = w[co, ci, ky, kx]  with  q = j - 1 + kx.
    Out-of-image column taps (q < 0 or q >= width) are simply absent, which
    realises the conv's zero padding along W without padded activations.
    """
    wk = jnp.transpose(w, (2, 3, 1, 0)).astype(jnp.float32)   # (3, 3, cin, cout)
    slabs = []
    for ky in range(3):
        a = jnp.zeros((width * cin, width * cout), jnp.float32)
        for kx in range(3):
            shift = jnp.eye(width, width, k=1 - kx, dtype=jnp.float32)
            a = a + jnp.kron(shift, wk[ky, kx])
        slabs.append(a)
    return jnp.stack(slabs, axis=0)


def _vmem_limit_bytes(per_step_bytes):
    """Per-generation VMEM budget: double-buffered blocks + slack, capped below
    the physical capacity (64 MiB on v7x vs 128 MiB on v5e/v6e)."""
    try:
        cap = int(pltpu.get_tpu_info().vmem_capacity_bytes)
    except Exception:                       # pragma: no cover - conservative fallback
        cap = 64 * 1024 * 1024
    want = 2 * int(per_step_bytes) + (8 << 20)
    return int(min(max(want, 16 << 20), (cap * 3) // 4))


def double_conv_nhwc(x_nhwc, w1, b1, w2, b2):
    """Pallas DoubleConv forward with NHWC activations (no layout transposes).

    x_nhwc : (N, H, W, Cin) float32
    w1     : (Cout, Cin, 3, 3),  b1: (Cout,)    (PyTorch OIHW layout)
    w2     : (Cout, Cout, 3, 3), b2: (Cout,)
    returns: (N, H, W, Cout) float32
    """
    n, h, w, cin = x_nhwc.shape
    cout = w1.shape[0]

    # Wide, lane-dense layout: channels fastest along lanes, full image rows as
    # the matmul M dim.  Only a 2-row zero halo is materialised (combined halo
    # of both padding=1 convs); W/channels need no padding (band handles edges).
    xp = jnp.pad(x_nhwc.astype(jnp.float32), ((0, 0), (2, 2), (0, 0), (0, 0)))
    xw = xp.reshape(n, h + 4, w * cin)               # free row-major reshape

    a1 = _banded_weights(w1, cin, cout, w).astype(jnp.bfloat16)   # (3, W*Cin,  W*Cout)
    a2 = _banded_weights(w2, cout, cout, w).astype(jnp.bfloat16)  # (3, W*Cout, W*Cout)
    b1w = jnp.tile(b1.astype(jnp.float32), w).reshape(1, w * cout)
    b2w = jnp.tile(b2.astype(jnp.float32), w).reshape(1, w * cout)

    per_step_bytes = ((h + 4) * w * cin * 4 + a1.size * 2 + a2.size * 2
                      + (b1w.size + b2w.size) * 4 + h * w * cout * 4)
    flops = 2 * n * h * w * 9 * cout * (cin + cout)
    bytes_accessed = (xw.size * 4 + (a1.size + a2.size) * 2
                      + (b1w.size + b2w.size) * 4 + n * h * w * cout * 4)

    out_wide = pl.pallas_call(
        _double_conv_kernel,
        out_shape=jax.ShapeDtypeStruct((n, h, w * cout), jnp.float32),
        grid=(n,),
        in_specs=[
            pl.BlockSpec((1, h + 4, w * cin), lambda b: (b, 0, 0)),
            pl.BlockSpec((3, w * cin, w * cout), lambda b: (0, 0, 0)),
            pl.BlockSpec((1, w * cout), lambda b: (0, 0)),
            pl.BlockSpec((3, w * cout, w * cout), lambda b: (0, 0, 0)),
            pl.BlockSpec((1, w * cout), lambda b: (0, 0)),
        ],
        out_specs=pl.BlockSpec((1, h, w * cout), lambda b: (b, 0, 0)),
        compiler_params=pltpu.CompilerParams(
            dimension_semantics=("parallel",),
            vmem_limit_bytes=_vmem_limit_bytes(per_step_bytes)),
        cost_estimate=pl.CostEstimate(flops=int(flops), transcendentals=0,
                                      bytes_accessed=int(bytes_accessed)),
    )(xw, a1, b1w, a2, b2w)

    return out_wide.reshape(n, h, w, cout)           # free row-major reshape


def double_conv(x_nchw, w1, b1, w2, b2):
    """NCHW compatibility shim matching the PyTorch module signature.
    Prefer double_conv_nhwc in a real pipeline so these transposes vanish."""
    x_nhwc = jnp.transpose(x_nchw, (0, 2, 3, 1))
    out = double_conv_nhwc(x_nhwc, w1, b1, w2, b2)
    return jnp.transpose(out, (0, 3, 1, 2))


def _reference_double_conv(x, w1, b1, w2, b2):
    """Pure-JAX f32 reference (lax conv), NCHW, for the correctness check."""
    dn = jax.lax.conv_dimension_numbers(x.shape, w1.shape,
                                        ("NCHW", "OIHW", "NCHW"))
    h = jax.lax.conv_general_dilated(x, w1, (1, 1), ((1, 1), (1, 1)),
                                     dimension_numbers=dn)
    h = jnp.maximum(h + b1[None, :, None, None], 0.0)
    dn2 = jax.lax.conv_dimension_numbers(h.shape, w2.shape,
                                         ("NCHW", "OIHW", "NCHW"))
    o = jax.lax.conv_general_dilated(h, w2, (1, 1), ((1, 1), (1, 1)),
                                     dimension_numbers=dn2)
    return jnp.maximum(o + b2[None, :, None, None], 0.0)


if __name__ == "__main__":
    # DoubleConv(in_channels=4, out_channels=8) on a (2, 4, 16, 16) input.
    N, Cin, Cout, H, W = 2, 4, 8, 16, 16

    key = jax.random.PRNGKey(0)
    kx_, kw1, kb1, kw2, kb2 = jax.random.split(key, 5)

    x = jax.random.normal(kx_, (N, Cin, H, W), dtype=jnp.float32)

    fan1 = Cin * 9
    w1 = jax.random.uniform(kw1, (Cout, Cin, 3, 3), jnp.float32,
                            -1.0 / jnp.sqrt(fan1), 1.0 / jnp.sqrt(fan1))
    b1 = jax.random.uniform(kb1, (Cout,), jnp.float32,
                            -1.0 / jnp.sqrt(fan1), 1.0 / jnp.sqrt(fan1))
    fan2 = Cout * 9
    w2 = jax.random.uniform(kw2, (Cout, Cout, 3, 3), jnp.float32,
                            -1.0 / jnp.sqrt(fan2), 1.0 / jnp.sqrt(fan2))
    b2 = jax.random.uniform(kb2, (Cout,), jnp.float32,
                            -1.0 / jnp.sqrt(fan2), 1.0 / jnp.sqrt(fan2))

    out = jax.block_until_ready(double_conv(x, w1, b1, w2, b2))
    ref = jax.block_until_ready(_reference_double_conv(x, w1, b1, w2, b2))

    assert out.shape == (N, Cout, H, W)
    # bf16 MXU operands (f32 accumulation) -> relaxed tolerance vs f32 reference.
    assert jnp.allclose(out, ref, rtol=5e-2, atol=5e-2), "mismatch vs reference"

    print("KERNEL_OK")
</pallas_src>

<mosaic_0001>
module attributes {stable_mosaic.version = 11 : i64} {
  func.func @_double_conv_kernel(%arg0: i32, %arg1: memref<1x20x64xf32, #tpu.memory_space<vmem>>, %arg2: memref<3x64x128xbf16, #tpu.memory_space<vmem>>, %arg3: memref<1x128xf32, #tpu.memory_space<vmem>>, %arg4: memref<3x128x128xbf16, #tpu.memory_space<vmem>>, %arg5: memref<1x128xf32, #tpu.memory_space<vmem>>, %arg6: memref<1x16x128xf32, #tpu.memory_space<vmem>>) attributes {dimension_semantics = [#tpu.dimension_semantics<parallel>], iteration_bounds = array<i64: 2>, scalar_prefetch = 0 : i64, scratch_operands = 0 : i64, tpu.core_type = #tpu.core_type<tc>, window_params = [{transform_indices = @transform_0, window_bounds = array<i64: 1, 20, 64>}, {pipeline_mode = #tpu.pipeline_mode<synchronous>, transform_indices = @transform_1, window_bounds = array<i64: 3, 64, 128>}, {pipeline_mode = #tpu.pipeline_mode<synchronous>, transform_indices = @transform_2, window_bounds = array<i64: 1, 128>}, {pipeline_mode = #tpu.pipeline_mode<synchronous>, transform_indices = @transform_3, window_bounds = array<i64: 3, 128, 128>}, {pipeline_mode = #tpu.pipeline_mode<synchronous>, transform_indices = @transform_4, window_bounds = array<i64: 1, 128>}, {transform_indices = @transform_5, window_bounds = array<i64: 1, 16, 128>}]} {
    %c0 = arith.constant 0 : index
    %c0_0 = arith.constant 0 : index
    %c0_1 = arith.constant 0 : index
    %0 = vector.load %arg1[%c0, %c0_0, %c0_1] : memref<1x20x64xf32, #tpu.memory_space<vmem>>, vector<1x20x64xf32>
    %1 = vector.shape_cast %0 : vector<1x20x64xf32> to vector<20x64xf32>
    %2 = vector.extract_strided_slice %1 {offsets = [0, 0], sizes = [18, 64], strides = [1, 1]} : vector<20x64xf32> to vector<18x64xf32>
    %3 = arith.truncf %2 : vector<18x64xf32> to vector<18x64xbf16>
    %c0_2 = arith.constant 0 : index
    %c0_3 = arith.constant 0 : index
    %c0_4 = arith.constant 0 : index
    %4 = vector.load %arg2[%c0_2, %c0_3, %c0_4] : memref<3x64x128xbf16, #tpu.memory_space<vmem>>, vector<1x64x128xbf16>
    %5 = vector.shape_cast %4 : vector<1x64x128xbf16> to vector<64x128xbf16>
    %cst = arith.constant dense<0.000000e+00> : vector<18x128xf32>
    %6 = tpu.matmul %3, %5, %cst {dimension_numbers = #tpu.dot_dimension_numbers<[1], [0], [0], [1], [0, 0, 1, 1], [], []>} : vector<18x64xbf16>, vector<64x128xbf16>, vector<18x128xf32> -> vector<18x128xf32>
    %7 = vector.extract_strided_slice %1 {offsets = [1, 0], sizes = [18, 64], strides = [1, 1]} : vector<20x64xf32> to vector<18x64xf32>
    %8 = arith.truncf %7 : vector<18x64xf32> to vector<18x64xbf16>
    %c1 = arith.constant 1 : index
    %c0_5 = arith.constant 0 : index
    %c0_6 = arith.constant 0 : index
    %9 = vector.load %arg2[%c1, %c0_5, %c0_6] : memref<3x64x128xbf16, #tpu.memory_space<vmem>>, vector<1x64x128xbf16>
    %10 = vector.shape_cast %9 : vector<1x64x128xbf16> to vector<64x128xbf16>
    %cst_7 = arith.constant dense<0.000000e+00> : vector<18x128xf32>
    %11 = tpu.matmul %8, %10, %cst_7 {dimension_numbers = #tpu.dot_dimension_numbers<[1], [0], [0], [1], [0, 0, 1, 1], [], []>} : vector<18x64xbf16>, vector<64x128xbf16>, vector<18x128xf32> -> vector<18x128xf32>
    %12 = arith.addf %6, %11 : vector<18x128xf32>
    %13 = vector.extract_strided_slice %1 {offsets = [2, 0], sizes = [18, 64], strides = [1, 1]} : vector<20x64xf32> to vector<18x64xf32>
    %14 = arith.truncf %13 : vector<18x64xf32> to vector<18x64xbf16>
    %c2 = arith.constant 2 : index
    %c0_8 = arith.constant 0 : index
    %c0_9 = arith.constant 0 : index
    %15 = vector.load %arg2[%c2, %c0_8, %c0_9] : memref<3x64x128xbf16, #tpu.memory_space<vmem>>, vector<1x64x128xbf16>
    %16 = vector.shape_cast %15 : vector<1x64x128xbf16> to vector<64x128xbf16>
    %cst_10 = arith.constant dense<0.000000e+00> : vector<18x128xf32>
    %17 = tpu.matmul %14, %16, %cst_10 {dimension_numbers = #tpu.dot_dimension_numbers<[1], [0], [0], [1], [0, 0, 1, 1], [], []>} : vector<18x64xbf16>, vector<64x128xbf16>, vector<18x128xf32> -> vector<18x128xf32>
    %18 = arith.addf %12, %17 : vector<18x128xf32>
    %19 = tpu.iota {dimensions = array<i32: 0>} : vector<18x128xi32>
    %c1_i32 = arith.constant 1 : i32
    %20 = vector.broadcast %c1_i32 : i32 to vector<18x128xi32>
    %21 = arith.cmpi sge, %19, %20 : vector<18x128xi32>
    %c16_i32 = arith.constant 16 : i32
    %22 = vector.broadcast %c16_i32 : i32 to vector<18x128xi32>
    %23 = arith.cmpi sle, %19, %22 : vector<18x128xi32>
    %24 = arith.andi %21, %23 : vector<18x128xi1>
    %c0_11 = arith.constant 0 : index
    %c0_12 = arith.constant 0 : index
    %25 = vector.load %arg3[%c0_11, %c0_12] : memref<1x128xf32, #tpu.memory_space<vmem>>, vector<1x128xf32>
    %26 = vector.broadcast %25 : vector<1x128xf32> to vector<18x128xf32>
    %27 = arith.addf %18, %26 : vector<18x128xf32>
    %cst_13 = arith.constant 0.000000e+00 : f32
    %28 = vector.broadcast %cst_13 : f32 to vector<18x128xf32>
    %29 = arith.maximumf %27, %28 : vector<18x128xf32>
    %cst_14 = arith.constant 0.000000e+00 : f32
    %30 = vector.broadcast %cst_14 : f32 to vector<18x128xf32>
    %31 = arith.select %24, %29, %30 : vector<18x128xi1>, vector<18x128xf32>
    %32 = vector.extract_strided_slice %31 {offsets = [0, 0], sizes = [16, 128], strides = [1, 1]} : vector<18x128xf32> to vector<16x128xf32>
    %33 = arith.truncf %32 : vector<16x128xf32> to vector<16x128xbf16>
    %c0_15 = arith.constant 0 : index
    %c0_16 = arith.constant 0 : index
    %c0_17 = arith.constant 0 : index
    %34 = vector.load %arg4[%c0_15, %c0_16, %c0_17] : memref<3x128x128xbf16, #tpu.memory_space<vmem>>, vector<1x128x128xbf16>
    %35 = vector.shape_cast %34 : vector<1x128x128xbf16> to vector<128x128xbf16>
    %cst_18 = arith.constant dense<0.000000e+00> : vector<16x128xf32>
    %36 = tpu.matmul %33, %35, %cst_18 {dimension_numbers = #tpu.dot_dimension_numbers<[1], [0], [0], [1], [0, 0, 1, 1], [], []>} : vector<16x128xbf16>, vector<128x128xbf16>, vector<16x128xf32> -> vector<16x128xf32>
    %37 = vector.extract_strided_slice %31 {offsets = [1, 0], sizes = [16, 128], strides = [1, 1]} : vector<18x128xf32> to vector<16x128xf32>
    %38 = arith.truncf %37 : vector<16x128xf32> to vector<16x128xbf16>
    %c1_19 = arith.constant 1 : index
    %c0_20 = arith.constant 0 : index
    %c0_21 = arith.constant 0 : index
    %39 = vector.load %arg4[%c1_19, %c0_20, %c0_21] : memref<3x128x128xbf16, #tpu.memory_space<vmem>>, vector<1x128x128xbf16>
    %40 = vector.shape_cast %39 : vector<1x128x128xbf16> to vector<128x128xbf16>
    %cst_22 = arith.constant dense<0.000000e+00> : vector<16x128xf32>
    %41 = tpu.matmul %38, %40, %cst_22 {dimension_numbers = #tpu.dot_dimension_numbers<[1], [0], [0], [1], [0, 0, 1, 1], [], []>} : vector<16x128xbf16>, vector<128x128xbf16>, vector<16x128xf32> -> vector<16x128xf32>
    %42 = arith.addf %36, %41 : vector<16x128xf32>
    %43 = vector.extract_strided_slice %31 {offsets = [2, 0], sizes = [16, 128], strides = [1, 1]} : vector<18x128xf32> to vector<16x128xf32>
    %44 = arith.truncf %43 : vector<16x128xf32> to vector<16x128xbf16>
    %c2_23 = arith.constant 2 : index
    %c0_24 = arith.constant 0 : index
    %c0_25 = arith.constant 0 : index
    %45 = vector.load %arg4[%c2_23, %c0_24, %c0_25] : memref<3x128x128xbf16, #tpu.memory_space<vmem>>, vector<1x128x128xbf16>
    %46 = vector.shape_cast %45 : vector<1x128x128xbf16> to vector<128x128xbf16>
    %cst_26 = arith.constant dense<0.000000e+00> : vector<16x128xf32>
    %47 = tpu.matmul %44, %46, %cst_26 {dimension_numbers = #tpu.dot_dimension_numbers<[1], [0], [0], [1], [0, 0, 1, 1], [], []>} : vector<16x128xbf16>, vector<128x128xbf16>, vector<16x128xf32> -> vector<16x128xf32>
    %48 = arith.addf %42, %47 : vector<16x128xf32>
    %c0_27 = arith.constant 0 : index
    %c0_28 = arith.constant 0 : index
    %49 = vector.load %arg5[%c0_27, %c0_28] : memref<1x128xf32, #tpu.memory_space<vmem>>, vector<1x128xf32>
    %50 = vector.broadcast %49 : vector<1x128xf32> to vector<16x128xf32>
    %51 = arith.addf %48, %50 : vector<16x128xf32>
    %cst_29 = arith.constant 0.000000e+00 : f32
    %52 = vector.broadcast %cst_29 : f32 to vector<16x128xf32>
    %53 = arith.maximumf %51, %52 : vector<16x128xf32>
    %c0_30 = arith.constant 0 : index
    %c0_31 = arith.constant 0 : index
    %c0_32 = arith.constant 0 : index
    %54 = vector.load %arg6[%c0_30, %c0_31, %c0_32] : memref<1x16x128xf32, #tpu.memory_space<vmem>>, vector<1x16x128xf32>
    %55 = vector.shape_cast %54 : vector<1x16x128xf32> to vector<16x128xf32>
    %56 = vector.shape_cast %53 : vector<16x128xf32> to vector<1x16x128xf32>
    tpu.vector_store %arg6[%c0_30, %c0_31, %c0_32], %56 {strides = array<i32>} : memref<1x16x128xf32, #tpu.memory_space<vmem>>, vector<1x16x128xf32>,
    return
  }
  func.func @transform_0(%arg0: i32) -> (i32, i32, i32) {
    %c0_i32 = arith.constant 0 : i32
    %c0_i32_0 = arith.constant 0 : i32
    %c0_i32_1 = arith.constant 0 : i32
    return %arg0, %c0_i32, %c0_i32_0 : i32, i32, i32
  }
  func.func @transform_1(%arg0: i32) -> (i32, i32, i32) {
    %c0_i32 = arith.constant 0 : i32
    %c0_i32_0 = arith.constant 0 : i32
    %c0_i32_1 = arith.constant 0 : i32
    %c0_i32_2 = arith.constant 0 : i32
    return %c0_i32, %c0_i32_0, %c0_i32_1 : i32, i32, i32
  }
  func.func @transform_2(%arg0: i32) -> (i32, i32) {
    %c0_i32 = arith.constant 0 : i32
    %c0_i32_0 = arith.constant 0 : i32
    %c0_i32_1 = arith.constant 0 : i32
    return %c0_i32, %c0_i32_0 : i32, i32
  }
  func.func @transform_3(%arg0: i32) -> (i32, i32, i32) {
    %c0_i32 = arith.constant 0 : i32
    %c0_i32_0 = arith.constant 0 : i32
    %c0_i32_1 = arith.constant 0 : i32
    %c0_i32_2 = arith.constant 0 : i32
    return %c0_i32, %c0_i32_0, %c0_i32_1 : i32, i32, i32
  }
  func.func @transform_4(%arg0: i32) -> (i32, i32) {
    %c0_i32 = arith.constant 0 : i32
    %c0_i32_0 = arith.constant 0 : i32
    %c0_i32_1 = arith.constant 0 : i32
    return %c0_i32, %c0_i32_0 : i32, i32
  }
  func.func @transform_5(%arg0: i32) -> (i32, i32, i32) {
    %c0_i32 = arith.constant 0 : i32
    %c0_i32_0 = arith.constant 0 : i32
    %c0_i32_1 = arith.constant 0 : i32
    return %arg0, %c0_i32, %c0_i32_0 : i32, i32, i32
  }
}

</mosaic_0001>

<llo_original>
// kernel: tpu_custom_call.1
$region0: #{tpu_custom_call.1}
  #allocation0 [shape = 'u32[]', space=smem, size = 0x4, offset = 0x4, fixed_abs, tag = 'smem constant byte address 0x4 - core index']
  #allocation1 [shape = 'u32[144,128]{1,0:T(1,128)}', space=vmem, size = 0x12000, scoped, tag = 'internal scratch']
  %s0 = inlined_call_operand.vmem [shape: f32[2,20,64], index: 0, kind: input, shape index: {}]
  %s1 = inlined_call_operand.hbm [shape: bf16[3,64,128], index: 1, kind: input, shape index: {}]
  %s2 = inlined_call_operand.vmem [shape: f32[1,128], index: 2, kind: input, shape index: {}]
  %s3 = inlined_call_operand.hbm [shape: bf16[3,128,128], index: 3, kind: input, shape index: {}]
  %s4 = inlined_call_operand.vmem [shape: f32[1,128], index: 4, kind: input, shape index: {}]
  %s5 = inlined_call_operand.hbm [shape: f32[2,16,128], index: 5, kind: output, shape index: {}]
  %s6 = sld [smem:[#allocation0]]
  $region61: #{tpu_custom_call.1} parent=0
    _
  %s8 = ssub.s32 1, %s6
  %s9 = scalar_select 0, %s8, %s6
  $region1: #{tpu_custom_call.1} parent=0
    #allocation2 [shape = 'u8[49152]{0}', space=vmem, size = 0xc000, scoped, tag = 'input window, operand 1, single buffered']
    #allocation3 [shape = 's32[2]{0}', space=sflag, size = 0x8, scoped, tag = 'scoped memory for tpu_custom_call.1']
    #allocation4 [shape = 's32[2]{0}', space=sflag, size = 0x8, scoped, tag = 'scoped memory for tpu_custom_call.1']
    #allocation5 [shape = 'u8[98304]{0}', space=vmem, size = 0x18000, scoped, tag = 'input window, operand 3, single buffered']
    #allocation6 [shape = 's32[1]{0}', space=sflag, size = 0x4, scoped, tag = 'scoped memory for tpu_custom_call.1']
    #allocation7 [shape = 'u8[16384]{0}', space=vmem, size = 0x4000, scoped, tag = 'output window, operand 0']
    %10 = vsyncpa [#allocation3], 0
    %11 = vsyncpa [#allocation6], 0
    %12 = vsyncpa [#allocation4], 0
    %s13 = scalar_lea.sflag [#allocation4], 1
    %14 = vsyncpa %s13, 0
    loop: start=0, step=1, limit=4
    $region2: #{tpu_custom_call.1} parent=1 // loop_pre_header
      _
    $region3: #{tpu_custom_call.1} parent=1 // loop_header
      %s16 = sphi 0, %s20
      %p17 = scmp.ge.s32.totalorder %s16, 4
      %s26 = sphi 0, %s28
      %s29 = sphi 0, %s26
      %s30 = sphi 0, %s29
      %s46 = sphi 0, %s30
      %s50 = sphi 0, %s50
      %s52 = sphi 0, %s50
      %s53 = sphi 0, %s52
      %s67 = sphi 0, %s53
      %s71 = sphi 0, %s71
      %s73 = sphi 0, %s71
      %s74 = sphi 0, %s73
      %s88 = sphi 0, %s74
      %s92 = sphi 0, %s92
      %s94 = sphi 0, %s92
      %s95 = sphi 0, %s94
      %s109 = sphi 0, %s95
      %s113 = sphi 0, %s113
      %s115 = sphi 0, %s113
      %s116 = sphi 0, %s115
      %s130 = sphi 0, %s116
      %s136 = sphi 0, %s138
      %s139 = sphi 0, %s136
      %s140 = sphi 0, %s139
      %s156 = sphi 0, %s140
    $region4: #{tpu_custom_call.1} parent=1 // loop_header_branch
      %19 = sbr.rel (%p17) target = $region8
    $region5: #{tpu_custom_call.1} parent=1 // loop_body
      %s21 = ssub.s32 %s16, 1
      %s22 = ssub.s32 %s16, 2
      %s23 = sadd.s32 %s16, 1
      %s24 = ssub.s32 %s16, %s23
      %p25 = scmp.eq.s32.totalorder %s24, 0
      %s27 = sadd.s32 %s26, 1
      %s28 = scalar_select %p25, %s26, %s27
      %p31 = pneg %p25
      %p32 = scmp.eq.s32.totalorder %s16, 1
      %p33 = por %p31, %p32
      %p34 = scmp.ne.s32.totalorder %s26, %s29
      %p35 = scmp.eq.s32.totalorder %s16, 0
      %p36 = por %p34, %p35
      %p37 = scmp.ne.s32.totalorder %s26, %s29
      %p38 = scmp.eq.s32.totalorder %s21, 1
      %p39 = por %p37, %p38
      %p40 = scmp.ne.s32.totalorder %s29, %s30
      %p41 = scmp.eq.s32.totalorder %s21, 0
      %p42 = por %p40, %p41
      %p43 = scmp.ne.s32.totalorder %s29, %s30
      %p44 = scmp.eq.s32.totalorder %s22, 1
      %p45 = por %p43, %p44
      %p47 = scmp.ne.s32.totalorder %s30, %s46
      %p48 = scmp.eq.s32.totalorder %s22, 0
      %p49 = por %p47, %p48
      %s51 = sadd.s32 %s50, 1
      %p54 = scmp.eq.s32.totalorder %s16, 1
      %p55 = scmp.ne.s32.totalorder %s50, %s52
      %p56 = scmp.eq.s32.totalorder %s16, 0
      %p57 = por %p55, %p56
      %p58 = scmp.ne.s32.totalorder %s50, %s52
      %p59 = scmp.eq.s32.totalorder %s21, 1
      %p60 = por %p58, %p59
      %p61 = scmp.ne.s32.totalorder %s52, %s53
      %p62 = scmp.eq.s32.totalorder %s21, 0
      %p63 = por %p61, %p62
      %p64 = scmp.ne.s32.totalorder %s52, %s53
      %p65 = scmp.eq.s32.totalorder %s22, 1
      %p66 = por %p64, %p65
      %p68 = scmp.ne.s32.totalorder %s53, %s67
      %p69 = scmp.eq.s32.totalorder %s22, 0
      %p70 = por %p68, %p69
      %s72 = sadd.s32 %s71, 1
      %p75 = scmp.eq.s32.totalorder %s16, 1
      %p76 = scmp.ne.s32.totalorder %s71, %s73
      %p77 = scmp.eq.s32.totalorder %s16, 0
      %p78 = por %p76, %p77
      %p79 = scmp.ne.s32.totalorder %s71, %s73
      %p80 = scmp.eq.s32.totalorder %s21, 1
      %p81 = por %p79, %p80
      %p82 = scmp.ne.s32.totalorder %s73, %s74
      %p83 = scmp.eq.s32.totalorder %s21, 0
      %p84 = por %p82, %p83
      %p85 = scmp.ne.s32.totalorder %s73, %s74
      %p86 = scmp.eq.s32.totalorder %s22, 1
      %p87 = por %p85, %p86
      %p89 = scmp.ne.s32.totalorder %s74, %s88
      %p90 = scmp.eq.s32.totalorder %s22, 0
      %p91 = por %p89, %p90
      %s93 = sadd.s32 %s92, 1
      %p96 = scmp.eq.s32.totalorder %s16, 1
      %p97 = scmp.ne.s32.totalorder %s92, %s94
      %p98 = scmp.eq.s32.totalorder %s16, 0
      %p99 = por %p97, %p98
      %p100 = scmp.ne.s32.totalorder %s92, %s94
      %p101 = scmp.eq.s32.totalorder %s21, 1
      %p102 = por %p100, %p101
      %p103 = scmp.ne.s32.totalorder %s94, %s95
      %p104 = scmp.eq.s32.totalorder %s21, 0
      %p105 = por %p103, %p104
      %p106 = scmp.ne.s32.totalorder %s94, %s95
      %p107 = scmp.eq.s32.totalorder %s22, 1
      %p108 = por %p106, %p107
      %p110 = scmp.ne.s32.totalorder %s95, %s109
      %p111 = scmp.eq.s32.totalorder %s22, 0
      %p112 = por %p110, %p111
      %s114 = sadd.s32 %s113, 1
      %p117 = scmp.eq.s32.totalorder %s16, 1
      %p118 = scmp.ne.s32.totalorder %s113, %s115
      %p119 = scmp.eq.s32.totalorder %s16, 0
      %p120 = por %p118, %p119
      %p121 = scmp.ne.s32.totalorder %s113, %s115
      %p122 = scmp.eq.s32.totalorder %s21, 1
      %p123 = por %p121, %p122
      %p124 = scmp.ne.s32.totalorder %s115, %s116
      %p125 = scmp.eq.s32.totalorder %s21, 0
      %p126 = por %p124, %p125
      %p127 = scmp.ne.s32.totalorder %s115, %s116
      %p128 = scmp.eq.s32.totalorder %s22, 1
      %p129 = por %p127, %p128
      %p131 = scmp.ne.s32.totalorder %s116, %s130
      %p132 = scmp.eq.s32.totalorder %s22, 0
      %p133 = por %p131, %p132
      %s134 = ssub.s32 %s16, %s23
      %p135 = scmp.eq.s32.totalorder %s134, 0
      %s137 = sadd.s32 %s136, 1
      %s138 = scalar_select %p135, %s136, %s137
      %p141 = pneg %p135
      %p142 = scmp.eq.s32.totalorder %s16, 1
      %p143 = por %p141, %p142
      %p144 = scmp.ne.s32.totalorder %s136, %s139
      %p145 = scmp.eq.s32.totalorder %s16, 0
      %p146 = por %p144, %p145
      %p147 = scmp.ne.s32.totalorder %s136, %s139
      %p148 = scmp.eq.s32.totalorder %s21, 1
      %p149 = por %p147, %p148
      %p150 = scmp.ne.s32.totalorder %s139, %s140
      %p151 = scmp.eq.s32.totalorder %s21, 0
      %p152 = por %p150, %p151
      %p153 = scmp.ne.s32.totalorder %s139, %s140
      %p154 = scmp.eq.s32.totalorder %s22, 1
      %p155 = por %p153, %p154
      %p157 = scmp.ne.s32.totalorder %s140, %s156
      %p158 = scmp.eq.s32.totalorder %s22, 0
      %p159 = por %p157, %p158
      %p160 = scmp.le.s32.totalorder 1, %s16
      %p161 = scmp.lt.s32.totalorder %s16, 3
      %p162 = pnand %p160, %p161
      %p163 = pneg %p162
      // Predicated region
      $region9: #{tpu_custom_call.1} parent=5 // pred_check
        _
      $region10: #{tpu_custom_call.1} parent=5 // pred_check_branch
        %165 = sbr.rel (%p162) target = $region12
      $region11: #{tpu_custom_call.1} parent=5 // pred_region
        %s166 = ssub.s32 %s16, 1
        // Predicated region
        $region13: #{tpu_custom_call.1} parent=11 // pred_check
          %p167 = pneg %p63
        $region14: #{tpu_custom_call.1} parent=11 // pred_check_branch
          %169 = sbr.rel (%p167) target = $region16
        $region15: #{tpu_custom_call.1} parent=11 // pred_region
          %s171 = ssub.s32 1536, 1536
          %172 = vsyncadd [#allocation3], %s171
          %s173 = sshll.u32 [#allocation2], 4
          %s174 = int_to_ptr.vmem [resolvable:$true] %s173
          %179 = dma.hbm_to_vmem [thread:$0]  %s1, 1536, %s174, [#allocation3], 64, 64, 4
        $region16: #{tpu_custom_call.1} parent=11 // pred_fallthru
          _
        // Predicated region
        $region17: #{tpu_custom_call.1} parent=11 // pred_check
          %p180 = pneg %p84
        $region18: #{tpu_custom_call.1} parent=11 // pred_check_branch
          %182 = sbr.rel (%p180) target = $region20
        $region19: #{tpu_custom_call.1} parent=11 // pred_region
          _
        $region20: #{tpu_custom_call.1} parent=11 // pred_fallthru
          _
        // Predicated region
        $region21: #{tpu_custom_call.1} parent=11 // pred_check
          %p183 = pneg %p105
        $region22: #{tpu_custom_call.1} parent=11 // pred_check_branch
          %185 = sbr.rel (%p183) target = $region24
        $region23: #{tpu_custom_call.1} parent=11 // pred_region
          %s187 = ssub.s32 3072, 3072
          %188 = vsyncadd [#allocation6], %s187
          %s189 = sshll.u32 [#allocation5], 4
          %s190 = int_to_ptr.vmem [resolvable:$true] %s189
          %195 = dma.hbm_to_vmem [thread:$0]  %s3, 3072, %s190, [#allocation6], 64, 64, 4
        $region24: #{tpu_custom_call.1} parent=11 // pred_fallthru
          _
        // Predicated region
        $region25: #{tpu_custom_call.1} parent=11 // pred_check
          %p196 = pneg %p126
        $region26: #{tpu_custom_call.1} parent=11 // pred_check_branch
          %198 = sbr.rel (%p196) target = $region28
        $region27: #{tpu_custom_call.1} parent=11 // pred_region
          _
        $region28: #{tpu_custom_call.1} parent=11 // pred_fallthru
          _
      $region12: #{tpu_custom_call.1} parent=5 // pred_fallthru
        _
      %p199 = scmp.lt.s32.totalorder %s16, 2
      // Predicated region
      $region29: #{tpu_custom_call.1} parent=5 // pred_check
        %p200 = pneg %p199
      $region30: #{tpu_custom_call.1} parent=5 // pred_check_branch
        %202 = sbr.rel (%p200) target = $region32
      $region31: #{tpu_custom_call.1} parent=5 // pred_region
        // Predicated region
        $region33: #{tpu_custom_call.1} parent=31 // pred_check
          %p203 = pneg %p36
        $region34: #{tpu_custom_call.1} parent=31 // pred_check_branch
          %205 = sbr.rel (%p203) target = $region36
        $region35: #{tpu_custom_call.1} parent=31 // pred_region
          %p206 = scmp.lt.s32.totalorder %s16, 1
          %s207 = scalar_select %p206, %s16, 1
          %s208 = smul.addr %s207, 3
          %s209 = smul.addr %s208, 8
          %s210 = scalar_lea.vmem %s0, %s209
        $region36: #{tpu_custom_call.1} parent=31 // pred_fallthru
          _
      $region32: #{tpu_custom_call.1} parent=5 // pred_fallthru
        _
      %p211 = scmp.le.s32.totalorder 1, %s16
      %p212 = scmp.lt.s32.totalorder %s16, 3
      %p213 = pnand %p211, %p212
      %p214 = pneg %p213
      // Predicated region
      $region37: #{tpu_custom_call.1} parent=5 // pred_check
        _
      $region38: #{tpu_custom_call.1} parent=5 // pred_check_branch
        %216 = sbr.rel (%p213) target = $region40
      $region39: #{tpu_custom_call.1} parent=5 // pred_region
        %s217 = ssub.s32 %s16, 1
        // Predicated region
        $region41: #{tpu_custom_call.1} parent=39 // pred_check
          %p218 = pneg %p63
        $region42: #{tpu_custom_call.1} parent=39 // pred_check_branch
          %220 = sbr.rel (%p218) target = $region44
        $region43: #{tpu_custom_call.1} parent=39 // pred_region
          %221 = dma.done [#allocation3], 1536
        $region44: #{tpu_custom_call.1} parent=39 // pred_fallthru
          _
        // Predicated region
        $region45: #{tpu_custom_call.1} parent=39 // pred_check
          %p222 = pneg %p105
        $region46: #{tpu_custom_call.1} parent=39 // pred_check_branch
          %224 = sbr.rel (%p222) target = $region48
        $region47: #{tpu_custom_call.1} parent=39 // pred_region
          %225 = dma.done [#allocation6], 3072
        $region48: #{tpu_custom_call.1} parent=39 // pred_fallthru
          _
        %p226 = scmp.lt.s32.totalorder %s21, 1
        %s227 = scalar_select %p226, %s21, 1
        %s228 = smul.addr %s227, 3
        %s229 = smul.addr %s228, 8
        %s230 = scalar_lea.vmem %s0, %s229
        %p231 = pneg %p42
        %p232 = pneg %p39
        %p233 = pneg %p63
        %p234 = pneg %p60
        %p235 = pneg %p84
        %p236 = pneg %p81
        %p237 = pneg %p105
        %p238 = pneg %p102
        %p239 = pneg %p126
        %p240 = pneg %p123
        %p241 = pneg %p152
        %p242 = pneg %p149
        %s243 = sand.u32 %s139, 1
        %s244 = scalar_lea.sflag [#allocation4], %s243
        %s245 = sand.u32 %s139, 1
        %s246 = smul.addr %s245, 16
        %s247 = scalar_lea.vmem [#allocation7], %s246
        %p248 = scmp.lt.s32.totalorder %s21, 1
        %s249 = scalar_select %p248, %s21, 1
        %s250 = smul.addr %s249, 3
        %s251 = smul.addr %s250, 8
        %s252 = scalar_lea.vmem %s0, %s251
        %v254 = vld [vmem:[%s252] sm:$0xff]
        %v255 = vld [vmem:[%s252 + $0x8] sm:$0xff]
        %v256 = vld [vmem:[%s252 + $0x10] sm:$0xf]
        %v257 = vpack.c.bf16 %v255, %v254
        %v258 = vpack.c.bf16 %v256, %v256
        %v259 = vld [vmem:[#allocation2] sm:$0xf]
        %v260 = vld [vmem:[#allocation2 + $0x4] sm:$0xf]
        %v261 = vld [vmem:[#allocation2 + $0x8] sm:$0xf]
        %v262 = vld [vmem:[#allocation2 + $0xc] sm:$0xf]
        %v263 = vld [vmem:[#allocation2 + $0x10] sm:$0xf]
        %v264 = vld [vmem:[#allocation2 + $0x14] sm:$0xf]
        %v265 = vld [vmem:[#allocation2 + $0x18] sm:$0xf]
        %v266 = vld [vmem:[#allocation2 + $0x1c] sm:$0xf]
        %s267 = scalar_lea.vmem [#allocation2], 32
        %v268 = vld [vmem:[%s267] sm:$0xf]
        %v269 = vld [vmem:[%s267 + $0x4] sm:$0xf]
        %v270 = vld [vmem:[%s267 + $0x8] sm:$0xf]
        %v271 = vld [vmem:[%s267 + $0xc] sm:$0xf]
        %v272 = vld [vmem:[%s267 + $0x10] sm:$0xf]
        %v273 = vld [vmem:[%s267 + $0x14] sm:$0xf]
        %v274 = vld [vmem:[%s267 + $0x18] sm:$0xf]
        %v275 = vld [vmem:[%s267 + $0x1c] sm:$0xf]
        %vm276 = vsmask.f32 7424
        %v278 = vshrl.u32 %v257, 16
        %v280 = vshll.u32 %v257, 16
        %v282 = vrot.slane %v280, 1
        %v283 = vor.u32 %v278, %v282
        %v285 = vshll.u32 %v258, 16
        %v287 = vrot.slane %v285, 1
        %v288 = vsel %vm276, %v283, %v287
        %v289 = vshrl.u32 %v258, 16
        %v291 = vor.u32 %v289, %v287
        %v300 = vunpack.c.l.b16 %v268
        %v301 = vunpack.c.l.b16 %v269
        %v302 = vunpack.c.l.b16 %v270
        %v303 = vunpack.c.l.b16 %v271
        %v304 = vunpack.c.l.b16 %v272
        %v305 = vunpack.c.l.b16 %v273
        %v306 = vunpack.c.l.b16 %v274
        %v307 = vunpack.c.l.b16 %v275
        %v308 = vpack.c.b16 %v301, %v300
        %v309 = vpack.c.b16 %v303, %v302
        %v310 = vpack.c.b16 %v305, %v304
        %v311 = vpack.c.b16 %v307, %v306
        %vm316 = vcmask 523264
        %v318 = vsel %vm316, %v288, 0
        %v321 = vsel %vm316, %v291, 0
        %323 = vmatprep.subr.bf16.mxu0 0
        %324 = vmatpush1.bf16.msra.mxu0 %v308
        %325 = vmatprep.subr.bf16.mxu0 0
        %326 = vmatpush1.bf16.msra.mxu0 %v309
        %327 = vmatprep.subr.bf16.mxu0 0
        %328 = vmatpush1.bf16.msra.mxu0 %v310
        %329 = vmatprep.subr.bf16.mxu0 0
        %330 = vmatpush1.bf16.msra.mxu0 %v311
        %331 = vmatprep.subr.bf16.mxu0 0
        %332 = vmatpush1.bf16.msra.mxu0 0
        %333 = vmatprep.subr.bf16.mxu0 0
        %334 = vmatpush1.bf16.msra.mxu0 0
        %335 = vmatprep.subr.bf16.mxu0 0
        %336 = vmatpush1.bf16.msra.mxu0 0
        %337 = vmatprep.subr.bf16.mxu0 0
        %338 = vmatpush1.bf16.msra.mxu0 0
        %339 = vmatprep.subr.bf16.mxu0 0
        %340 = vmatpush1.bf16.msra.mxu0 0
        %341 = vmatprep.subr.bf16.mxu0 0
        %342 = vmatpush1.bf16.msra.mxu0 0
        %343 = vmatprep.subr.bf16.mxu0 0
        %344 = vmatpush1.bf16.msra.mxu0 0
        %345 = vmatprep.subr.bf16.mxu0 0
        %346 = vmatpush1.bf16.msra.mxu0 0
        %347 = vmatprep.subr.bf16.mxu0 0
        %348 = vmatpush1.bf16.msra.mxu0 0
        %349 = vmatprep.subr.bf16.mxu0 0
        %350 = vmatpush1.bf16.msra.mxu0 0
        %351 = vmatprep.subr.bf16.mxu0 0
        %352 = vmatpush1.bf16.msra.mxu0 0
        %353 = vmatprep.subr.bf16.mxu0 0
        %354 = vmatpush1.bf16.msra.mxu0 0
        %355 = vmatprep.mubr.bf16.mxu0 0
        %356 = vmatmul.mubr.bf16.gmra.mrb[0].mxu0 %v318
        %v357 = vpop.f32.mrb[0].mxu0
        %v358 = vadd.f32 0.0, %v357
        %v359 = vpop.f32.mrb[0].mxu0
        %v360 = vpop.f32.mrb[0].mxu0
        %v361 = vadd.f32 0.0, %v360
        %v362 = vpop.f32.mrb[0].mxu0
        %363 = vmatprep.mubr.bf16.mxu0 0
        %364 = vmatmul.mubr.bf16.gmra.mrb[0].mxu0 %v321
        %v365 = vpop.f32.mrb[0].mxu0
        %v366 = vadd.f32 0.0, %v365
        %v367 = vpop.f32.mrb[0].mxu0
        %v368 = vpop.f32.mrb[0].mxu0
        %v369 = vpop.f32.mrb[0].mxu0
        %370 = vdwg.mxu0
        %v379 = vunpack.c.l.b16 %v259
        %v380 = vunpack.c.l.b16 %v260
        %v381 = vunpack.c.l.b16 %v261
        %v382 = vunpack.c.l.b16 %v262
        %v383 = vunpack.c.l.b16 %v263
        %v384 = vunpack.c.l.b16 %v264
        %v385 = vunpack.c.l.b16 %v265
        %v386 = vunpack.c.l.b16 %v266
        %v387 = vpack.c.b16 %v380, %v379
        %v388 = vpack.c.b16 %v382, %v381
        %v389 = vpack.c.b16 %v384, %v383
        %v390 = vpack.c.b16 %v386, %v385
        %v395 = vsel %vm316, %v257, 0
        %v397 = vsel %vm316, %v258, 0
        %399 = vmatprep.subr.bf16.mxu0 0
        %400 = vmatpush1.bf16.msra.mxu0 %v387
        %401 = vmatprep.subr.bf16.mxu0 0
        %402 = vmatpush1.bf16.msra.mxu0 %v388
        %403 = vmatprep.subr.bf16.mxu0 0
        %404 = vmatpush1.bf16.msra.mxu0 %v389
        %405 = vmatprep.subr.bf16.mxu0 0
        %406 = vmatpush1.bf16.msra.mxu0 %v390
        %407 = vmatprep.subr.bf16.mxu0 0
        %408 = vmatpush1.bf16.msra.mxu0 0
        %409 = vmatprep.subr.bf16.mxu0 0
        %410 = vmatpush1.bf16.msra.mxu0 0
        %411 = vmatprep.subr.bf16.mxu0 0
        %412 = vmatpush1.bf16.msra.mxu0 0
        %413 = vmatprep.subr.bf16.mxu0 0
        %414 = vmatpush1.bf16.msra.mxu0 0
        %415 = vmatprep.subr.bf16.mxu0 0
        %416 = vmatpush1.bf16.msra.mxu0 0
        %417 = vmatprep.subr.bf16.mxu0 0
        %418 = vmatpush1.bf16.msra.mxu0 0
        %419 = vmatprep.subr.bf16.mxu0 0
        %420 = vmatpush1.bf16.msra.mxu0 0
        %421 = vmatprep.subr.bf16.mxu0 0
        %422 = vmatpush1.bf16.msra.mxu0 0
        %423 = vmatprep.subr.bf16.mxu0 0
        %424 = vmatpush1.bf16.msra.mxu0 0
        %425 = vmatprep.subr.bf16.mxu0 0
        %426 = vmatpush1.bf16.msra.mxu0 0
        %427 = vmatprep.subr.bf16.mxu0 0
        %428 = vmatpush1.bf16.msra.mxu0 0
        %429 = vmatprep.subr.bf16.mxu0 0
        %430 = vmatpush1.bf16.msra.mxu0 0
        %431 = vmatprep.mubr.bf16.mxu0 0
        %432 = vmatmul.mubr.bf16.gmra.mrb[0].mxu0 %v395
        %v433 = vpop.f32.mrb[0].mxu0
        %v434 = vadd.f32 %v358, %v433
        %v435 = vpop.f32.mrb[0].mxu0
        %v436 = vpop.f32.mrb[0].mxu0
        %v437 = vadd.f32 %v361, %v436
        %v438 = vpop.f32.mrb[0].mxu0
        %439 = vmatprep.mubr.bf16.mxu0 0
        %440 = vmatmul.mubr.bf16.gmra.mrb[0].mxu0 %v397
        %v441 = vpop.f32.mrb[0].mxu0
        %v442 = vadd.f32 %v366, %v441
        %v443 = vpop.f32.mrb[0].mxu0
        %v444 = vpop.f32.mrb[0].mxu0
        %v445 = vpop.f32.mrb[0].mxu0
        %446 = vdwg.mxu0
        %s447 = scalar_lea.vmem [#allocation2], 64
        %v448 = vld [vmem:[%s447] sm:$0xf]
        %v449 = vld [vmem:[%s447 + $0x4] sm:$0xf]
        %v450 = vld [vmem:[%s447 + $0x8] sm:$0xf]
        %v451 = vld [vmem:[%s447 + $0xc] sm:$0xf]
        %v452 = vld [vmem:[%s447 + $0x10] sm:$0xf]
        %v453 = vld [vmem:[%s447 + $0x14] sm:$0xf]
        %v454 = vld [vmem:[%s447 + $0x18] sm:$0xf]
        %v455 = vld [vmem:[%s447 + $0x1c] sm:$0xf]
        %vm458 = vcmask 1046528
        %v459 = vrot.slane %v257, 1
        %v460 = vrot.slane %v258, 1
        %v461 = vsel %vm458, %v459, %v460
        %v470 = vunpack.c.l.b16 %v448
        %v471 = vunpack.c.l.b16 %v449
        %v472 = vunpack.c.l.b16 %v450
        %v473 = vunpack.c.l.b16 %v451
        %v474 = vunpack.c.l.b16 %v452
        %v475 = vunpack.c.l.b16 %v453
        %v476 = vunpack.c.l.b16 %v454
        %v477 = vunpack.c.l.b16 %v455
        %v478 = vpack.c.b16 %v471, %v470
        %v479 = vpack.c.b16 %v473, %v472
        %v480 = vpack.c.b16 %v475, %v474
        %v481 = vpack.c.b16 %v477, %v476
        %v487 = vsel %vm316, %v461, 0
        %v490 = vsel %vm316, %v460, 0
        %492 = vmatprep.subr.bf16.mxu0 0
        %493 = vmatpush1.bf16.msra.mxu0 %v478
        %494 = vmatprep.subr.bf16.mxu0 0
        %495 = vmatpush1.bf16.msra.mxu0 %v479
        %496 = vmatprep.subr.bf16.mxu0 0
        %497 = vmatpush1.bf16.msra.mxu0 %v480
        %498 = vmatprep.subr.bf16.mxu0 0
        %499 = vmatpush1.bf16.msra.mxu0 %v481
        %500 = vmatprep.subr.bf16.mxu0 0
        %501 = vmatpush1.bf16.msra.mxu0 0
        %502 = vmatprep.subr.bf16.mxu0 0
        %503 = vmatpush1.bf16.msra.mxu0 0
        %504 = vmatprep.subr.bf16.mxu0 0
        %505 = vmatpush1.bf16.msra.mxu0 0
        %506 = vmatprep.subr.bf16.mxu0 0
        %507 = vmatpush1.bf16.msra.mxu0 0
        %508 = vmatprep.subr.bf16.mxu0 0
        %509 = vmatpush1.bf16.msra.mxu0 0
        %510 = vmatprep.subr.bf16.mxu0 0
        %511 = vmatpush1.bf16.msra.mxu0 0
        %512 = vmatprep.subr.bf16.mxu0 0
        %513 = vmatpush1.bf16.msra.mxu0 0
        %514 = vmatprep.subr.bf16.mxu0 0
        %515 = vmatpush1.bf16.msra.mxu0 0
        %516 = vmatprep.subr.bf16.mxu0 0
        %517 = vmatpush1.bf16.msra.mxu0 0
        %518 = vmatprep.subr.bf16.mxu0 0
        %519 = vmatpush1.bf16.msra.mxu0 0
        %520 = vmatprep.subr.bf16.mxu0 0
        %521 = vmatpush1.bf16.msra.mxu0 0
        %522 = vmatprep.subr.bf16.mxu0 0
        %523 = vmatpush1.bf16.msra.mxu0 0
        %524 = vmatprep.mubr.bf16.mxu0 0
        %525 = vmatmul.mubr.bf16.gmra.mrb[0].mxu0 %v487
        %v526 = vpop.f32.mrb[0].mxu0
        %v527 = vadd.f32 0.0, %v526
        %v528 = vpop.f32.mrb[0].mxu0
        %v529 = vpop.f32.mrb[0].mxu0
        %v530 = vadd.f32 0.0, %v529
        %v531 = vpop.f32.mrb[0].mxu0
        %532 = vmatprep.mubr.bf16.mxu0 0
        %533 = vmatmul.mubr.bf16.gmra.mrb[0].mxu0 %v490
        %v534 = vpop.f32.mrb[0].mxu0
        %v535 = vadd.f32 0.0, %v534
        %v536 = vpop.f32.mrb[0].mxu0
        %v537 = vpop.f32.mrb[0].mxu0
        %v538 = vpop.f32.mrb[0].mxu0
        %539 = vdwg.mxu0
        %v540 = vadd.f32 %v434, %v527
        %v541 = vadd.f32 %v437, %v530
        %v542 = vadd.f32 %v442, %v535
        %v543 = vlaneseq
        %v544 = vshrl.u32 %v543, 7
        %v545 = vadd.s32 %v544, 8
        %v546 = vadd.s32 %v544, 16
        %vm547 = vcmp.ge.s32.totalorder %v544, 1
        %vm548 = vcmp.ge.s32.totalorder %v545, 1
        %vm549 = vcmp.ge.s32.totalorder %v546, 1
        %vm550 = vcmp.le.s32.totalorder %v544, 16
        %vm551 = vcmp.le.s32.totalorder %v545, 16
        %vm552 = vcmp.le.s32.totalorder %v546, 16
        %vm553 = vmand %vm547, %vm550
        %vm554 = vmand %vm548, %vm551
        %vm555 = vmand %vm549, %vm552
        %v556 = vld [vmem:[%s2] sm:$0x1]
        %v558 = vlaneseq
        %v559 = vshrl.u32 %v558, 7
        %v560 = vsub.s32 0, %v559
        %v561 = vrot.slane %v556, %v560
        %v563 = vadd.f32 %v540, %v561
        %v564 = vadd.f32 %v541, %v561
        %v565 = vadd.f32 %v542, %v561
        %v566 = vmax.f32 %v563, 0.0
        %v567 = vmax.f32 %v564, 0.0
        %v568 = vmax.f32 %v565, 0.0
        %v569 = vsel %vm553, %v566, 0.0
        %v570 = vsel %vm554, %v567, 0.0
        %v571 = vsel %vm555, %v568, 0.0
        %v572 = vpack.c.bf16 %v570, %v569
        %v573 = vld [vmem:[#allocation5] sm:$0xf]
        %v574 = vld [vmem:[#allocation5 + $0x4] sm:$0xf]
        %v575 = vld [vmem:[#allocation5 + $0x8] sm:$0xf]
        %v576 = vld [vmem:[#allocation5 + $0xc] sm:$0xf]
        %v577 = vld [vmem:[#allocation5 + $0x10] sm:$0xf]
        %v578 = vld [vmem:[#allocation5 + $0x14] sm:$0xf]
        %v579 = vld [vmem:[#allocation5 + $0x18] sm:$0xf]
        %v580 = vld [vmem:[#allocation5 + $0x1c] sm:$0xf]
        %v581 = vld [vmem:[#allocation5 + $0x20] sm:$0xf]
        %v582 = vld [vmem:[#allocation5 + $0x24] sm:$0xf]
        %v583 = vld [vmem:[#allocation5 + $0x28] sm:$0xf]
        %v584 = vld [vmem:[#allocation5 + $0x2c] sm:$0xf]
        %v585 = vld [vmem:[#allocation5 + $0x30] sm:$0xf]
        %v586 = vld [vmem:[#allocation5 + $0x34] sm:$0xf]
        %v587 = vld [vmem:[#allocation5 + $0x38] sm:$0xf]
        %v588 = vld [vmem:[#allocation5 + $0x3c] sm:$0xf]
        %v589 = vpack.c.bf16 %v571, %v571
        %s590 = scalar_lea.vmem [#allocation5], 64
        %v591 = vld [vmem:[%s590] sm:$0xf]
        %v592 = vld [vmem:[%s590 + $0x4] sm:$0xf]
        %v593 = vld [vmem:[%s590 + $0x8] sm:$0xf]
        %v594 = vld [vmem:[%s590 + $0xc] sm:$0xf]
        %v595 = vld [vmem:[%s590 + $0x10] sm:$0xf]
        %v596 = vld [vmem:[%s590 + $0x14] sm:$0xf]
        %v597 = vld [vmem:[%s590 + $0x18] sm:$0xf]
        %v598 = vld [vmem:[%s590 + $0x1c] sm:$0xf]
        %v599 = vld [vmem:[%s590 + $0x20] sm:$0xf]
        %v600 = vld [vmem:[%s590 + $0x24] sm:$0xf]
        %v601 = vld [vmem:[%s590 + $0x28] sm:$0xf]
        %v602 = vld [vmem:[%s590 + $0x2c] sm:$0xf]
        %v603 = vld [vmem:[%s590 + $0x30] sm:$0xf]
        %v604 = vld [vmem:[%s590 + $0x34] sm:$0xf]
        %v605 = vld [vmem:[%s590 + $0x38] sm:$0xf]
        %v606 = vld [vmem:[%s590 + $0x3c] sm:$0xf]
        %v608 = vshrl.u32 %v572, 16
        %v610 = vshll.u32 %v572, 16
        %v612 = vrot.slane %v610, 1
        %v613 = vor.u32 %v608, %v612
        %v615 = vshll.u32 %v589, 16
        %v617 = vrot.slane %v615, 1
        %v618 = vsel %vm276, %v613, %v617
        %v636 = vunpack.c.l.b16 %v591
        %v637 = vunpack.c.l.b16 %v592
        %v638 = vunpack.c.l.b16 %v593
        %v639 = vunpack.c.l.b16 %v594
        %v640 = vunpack.c.l.b16 %v595
        %v641 = vunpack.c.l.b16 %v596
        %v642 = vunpack.c.l.b16 %v597
        %v643 = vunpack.c.l.b16 %v598
        %v644 = vunpack.c.l.b16 %v599
        %v645 = vunpack.c.l.b16 %v600
        %v646 = vunpack.c.l.b16 %v601
        %v647 = vunpack.c.l.b16 %v602
        %v648 = vunpack.c.l.b16 %v603
        %v649 = vunpack.c.l.b16 %v604
        %v650 = vunpack.c.l.b16 %v605
        %v651 = vunpack.c.l.b16 %v606
        %v652 = vpack.c.b16 %v637, %v636
        %v653 = vpack.c.b16 %v639, %v638
        %v654 = vpack.c.b16 %v641, %v640
        %v655 = vpack.c.b16 %v643, %v642
        %v656 = vpack.c.b16 %v645, %v644
        %v657 = vpack.c.b16 %v647, %v646
        %v658 = vpack.c.b16 %v649, %v648
        %v659 = vpack.c.b16 %v651, %v650
        %668 = vmatprep.subr.bf16.mxu0 0
        %669 = vmatpush1.bf16.msra.mxu0 %v652
        %670 = vmatprep.subr.bf16.mxu0 0
        %671 = vmatpush1.bf16.msra.mxu0 %v653
        %672 = vmatprep.subr.bf16.mxu0 0
        %673 = vmatpush1.bf16.msra.mxu0 %v654
        %674 = vmatprep.subr.bf16.mxu0 0
        %675 = vmatpush1.bf16.msra.mxu0 %v655
        %676 = vmatprep.subr.bf16.mxu0 0
        %677 = vmatpush1.bf16.msra.mxu0 %v656
        %678 = vmatprep.subr.bf16.mxu0 0
        %679 = vmatpush1.bf16.msra.mxu0 %v657
        %680 = vmatprep.subr.bf16.mxu0 0
        %681 = vmatpush1.bf16.msra.mxu0 %v658
        %682 = vmatprep.subr.bf16.mxu0 0
        %683 = vmatpush1.bf16.msra.mxu0 %v659
        %684 = vmatprep.subr.bf16.mxu0 0
        %685 = vmatpush1.bf16.msra.mxu0 0
        %686 = vmatprep.subr.bf16.mxu0 0
        %687 = vmatpush1.bf16.msra.mxu0 0
        %688 = vmatprep.subr.bf16.mxu0 0
        %689 = vmatpush1.bf16.msra.mxu0 0
        %690 = vmatprep.subr.bf16.mxu0 0
        %691 = vmatpush1.bf16.msra.mxu0 0
        %692 = vmatprep.subr.bf16.mxu0 0
        %693 = vmatpush1.bf16.msra.mxu0 0
        %694 = vmatprep.subr.bf16.mxu0 0
        %695 = vmatpush1.bf16.msra.mxu0 0
        %696 = vmatprep.subr.bf16.mxu0 0
        %697 = vmatpush1.bf16.msra.mxu0 0
        %698 = vmatprep.subr.bf16.mxu0 0
        %699 = vmatpush1.bf16.msra.mxu0 0
        %700 = vmatprep.mubr.bf16.mxu0 0
        %701 = vmatmul.mubr.bf16.gmra.mrb[0].mxu0 %v618
        %v702 = vpop.f32.mrb[0].mxu0
        %v703 = vadd.f32 0.0, %v702
        %v704 = vpop.f32.mrb[0].mxu0
        %v705 = vpop.f32.mrb[0].mxu0
        %v706 = vadd.f32 0.0, %v705
        %v707 = vpop.f32.mrb[0].mxu0
        %708 = vdwg.mxu0
        %v725 = vunpack.c.l.b16 %v573
        %v726 = vunpack.c.l.b16 %v574
        %v727 = vunpack.c.l.b16 %v575
        %v728 = vunpack.c.l.b16 %v576
        %v729 = vunpack.c.l.b16 %v577
        %v730 = vunpack.c.l.b16 %v578
        %v731 = vunpack.c.l.b16 %v579
        %v732 = vunpack.c.l.b16 %v580
        %v733 = vunpack.c.l.b16 %v581
        %v734 = vunpack.c.l.b16 %v582
        %v735 = vunpack.c.l.b16 %v583
        %v736 = vunpack.c.l.b16 %v584
        %v737 = vunpack.c.l.b16 %v585
        %v738 = vunpack.c.l.b16 %v586
        %v739 = vunpack.c.l.b16 %v587
        %v740 = vunpack.c.l.b16 %v588
        %v741 = vpack.c.b16 %v726, %v725
        %v742 = vpack.c.b16 %v728, %v727
        %v743 = vpack.c.b16 %v730, %v729
        %v744 = vpack.c.b16 %v732, %v731
        %v745 = vpack.c.b16 %v734, %v733
        %v746 = vpack.c.b16 %v736, %v735
        %v747 = vpack.c.b16 %v738, %v737
        %v748 = vpack.c.b16 %v740, %v739
        %757 = vmatprep.subr.bf16.mxu0 0
        %758 = vmatpush1.bf16.msra.mxu0 %v741
        %759 = vmatprep.subr.bf16.mxu0 0
        %760 = vmatpush1.bf16.msra.mxu0 %v742
        %761 = vmatprep.subr.bf16.mxu0 0
        %762 = vmatpush1.bf16.msra.mxu0 %v743
        %763 = vmatprep.subr.bf16.mxu0 0
        %764 = vmatpush1.bf16.msra.mxu0 %v744
        %765 = vmatprep.subr.bf16.mxu0 0
        %766 = vmatpush1.bf16.msra.mxu0 %v745
        %767 = vmatprep.subr.bf16.mxu0 0
        %768 = vmatpush1.bf16.msra.mxu0 %v746
        %769 = vmatprep.subr.bf16.mxu0 0
        %770 = vmatpush1.bf16.msra.mxu0 %v747
        %771 = vmatprep.subr.bf16.mxu0 0
        %772 = vmatpush1.bf16.msra.mxu0 %v748
        %773 = vmatprep.subr.bf16.mxu0 0
        %774 = vmatpush1.bf16.msra.mxu0 0
        %775 = vmatprep.subr.bf16.mxu0 0
        %776 = vmatpush1.bf16.msra.mxu0 0
        %777 = vmatprep.subr.bf16.mxu0 0
        %778 = vmatpush1.bf16.msra.mxu0 0
        %779 = vmatprep.subr.bf16.mxu0 0
        %780 = vmatpush1.bf16.msra.mxu0 0
        %781 = vmatprep.subr.bf16.mxu0 0
        %782 = vmatpush1.bf16.msra.mxu0 0
        %783 = vmatprep.subr.bf16.mxu0 0
        %784 = vmatpush1.bf16.msra.mxu0 0
        %785 = vmatprep.subr.bf16.mxu0 0
        %786 = vmatpush1.bf16.msra.mxu0 0
        %787 = vmatprep.subr.bf16.mxu0 0
        %788 = vmatpush1.bf16.msra.mxu0 0
        %789 = vmatprep.mubr.bf16.mxu0 0
        %790 = vmatmul.mubr.bf16.gmra.mrb[0].mxu0 %v572
        %v791 = vpop.f32.mrb[0].mxu0
        %v792 = vadd.f32 %v703, %v791
        %v793 = vpop.f32.mrb[0].mxu0
        %v794 = vpop.f32.mrb[0].mxu0
        %v795 = vadd.f32 %v706, %v794
        %v796 = vpop.f32.mrb[0].mxu0
        %797 = vdwg.mxu0
        %s798 = scalar_lea.vmem [#allocation5], 128
        %v799 = vld [vmem:[%s798] sm:$0xf]
        %v800 = vld [vmem:[%s798 + $0x4] sm:$0xf]
        %v801 = vld [vmem:[%s798 + $0x8] sm:$0xf]
        %v802 = vld [vmem:[%s798 + $0xc] sm:$0xf]
        %v803 = vld [vmem:[%s798 + $0x10] sm:$0xf]
        %v804 = vld [vmem:[%s798 + $0x14] sm:$0xf]
        %v805 = vld [vmem:[%s798 + $0x18] sm:$0xf]
        %v806 = vld [vmem:[%s798 + $0x1c] sm:$0xf]
        %v807 = vld [vmem:[%s798 + $0x20] sm:$0xf]
        %v808 = vld [vmem:[%s798 + $0x24] sm:$0xf]
        %v809 = vld [vmem:[%s798 + $0x28] sm:$0xf]
        %v810 = vld [vmem:[%s798 + $0x2c] sm:$0xf]
        %v811 = vld [vmem:[%s798 + $0x30] sm:$0xf]
        %v812 = vld [vmem:[%s798 + $0x34] sm:$0xf]
        %v813 = vld [vmem:[%s798 + $0x38] sm:$0xf]
        %v814 = vld [vmem:[%s798 + $0x3c] sm:$0xf]
        %v817 = vrot.slane %v572, 1
        %v818 = vrot.slane %v589, 1
        %v819 = vsel %vm458, %v817, %v818
        %v837 = vunpack.c.l.b16 %v799
        %v838 = vunpack.c.l.b16 %v800
        %v839 = vunpack.c.l.b16 %v801
        %v840 = vunpack.c.l.b16 %v802
        %v841 = vunpack.c.l.b16 %v803
        %v842 = vunpack.c.l.b16 %v804
        %v843 = vunpack.c.l.b16 %v805
        %v844 = vunpack.c.l.b16 %v806
        %v845 = vunpack.c.l.b16 %v807
        %v846 = vunpack.c.l.b16 %v808
        %v847 = vunpack.c.l.b16 %v809
        %v848 = vunpack.c.l.b16 %v810
        %v849 = vunpack.c.l.b16 %v811
        %v850 = vunpack.c.l.b16 %v812
        %v851 = vunpack.c.l.b16 %v813
        %v852 = vunpack.c.l.b16 %v814
        %v853 = vpack.c.b16 %v838, %v837
        %v854 = vpack.c.b16 %v840, %v839
        %v855 = vpack.c.b16 %v842, %v841
        %v856 = vpack.c.b16 %v844, %v843
        %v857 = vpack.c.b16 %v846, %v845
        %v858 = vpack.c.b16 %v848, %v847
        %v859 = vpack.c.b16 %v850, %v849
        %v860 = vpack.c.b16 %v852, %v851
        %869 = vmatprep.subr.bf16.mxu0 0
        %870 = vmatpush1.bf16.msra.mxu0 %v853
        %871 = vmatprep.subr.bf16.mxu0 0
        %872 = vmatpush1.bf16.msra.mxu0 %v854
        %873 = vmatprep.subr.bf16.mxu0 0
        %874 = vmatpush1.bf16.msra.mxu0 %v855
        %875 = vmatprep.subr.bf16.mxu0 0
        %876 = vmatpush1.bf16.msra.mxu0 %v856
        %877 = vmatprep.subr.bf16.mxu0 0
        %878 = vmatpush1.bf16.msra.mxu0 %v857
        %879 = vmatprep.subr.bf16.mxu0 0
        %880 = vmatpush1.bf16.msra.mxu0 %v858
        %881 = vmatprep.subr.bf16.mxu0 0
        %882 = vmatpush1.bf16.msra.mxu0 %v859
        %883 = vmatprep.subr.bf16.mxu0 0
        %884 = vmatpush1.bf16.msra.mxu0 %v860
        %885 = vmatprep.subr.bf16.mxu0 0
        %886 = vmatpush1.bf16.msra.mxu0 0
        %887 = vmatprep.subr.bf16.mxu0 0
        %888 = vmatpush1.bf16.msra.mxu0 0
        %889 = vmatprep.subr.bf16.mxu0 0
        %890 = vmatpush1.bf16.msra.mxu0 0
        %891 = vmatprep.subr.bf16.mxu0 0
        %892 = vmatpush1.bf16.msra.mxu0 0
        %893 = vmatprep.subr.bf16.mxu0 0
        %894 = vmatpush1.bf16.msra.mxu0 0
        %895 = vmatprep.subr.bf16.mxu0 0
        %896 = vmatpush1.bf16.msra.mxu0 0
        %897 = vmatprep.subr.bf16.mxu0 0
        %898 = vmatpush1.bf16.msra.mxu0 0
        %899 = vmatprep.subr.bf16.mxu0 0
        %900 = vmatpush1.bf16.msra.mxu0 0
        %901 = vmatprep.mubr.bf16.mxu0 0
        %902 = vmatmul.mubr.bf16.gmra.mrb[0].mxu0 %v819
        %v903 = vpop.f32.mrb[0].mxu0
        %v904 = vadd.f32 0.0, %v903
        %v905 = vpop.f32.mrb[0].mxu0
        %v906 = vpop.f32.mrb[0].mxu0
        %v907 = vadd.f32 0.0, %v906
        %v908 = vpop.f32.mrb[0].mxu0
        %909 = vdwg.mxu0
        %v910 = vadd.f32 %v792, %v904
        %v911 = vadd.f32 %v795, %v907
        %v912 = vld [vmem:[%s4] sm:$0x1]
        %v914 = vlaneseq
        %v915 = vshrl.u32 %v914, 7
        %v916 = vsub.s32 0, %v915
        %v917 = vrot.slane %v912, %v916
        %v919 = vadd.f32 %v910, %v917
        %v920 = vadd.f32 %v911, %v917
        %v921 = vmax.f32 %v919, 0.0
        %v922 = vmax.f32 %v920, 0.0
        %923 = vst [vmem:[%s247] sm:$0xff] %v921
        %924 = vst [vmem:[%s247 + $0x8] sm:$0xff] %v922
        %s925 = sand.u32 %s139, 1
        %s926 = scalar_lea.sflag [#allocation4], %s925
        %s927 = sand.u32 %s139, 1
        %s928 = smul.addr %s927, 16
        %s929 = scalar_lea.vmem [#allocation7], %s928
        // Predicated region
        $region49: #{tpu_custom_call.1} parent=39 // pred_check
          %p930 = pneg %p149
        $region50: #{tpu_custom_call.1} parent=39 // pred_check_branch
          %932 = sbr.rel (%p930) target = $region52
        $region51: #{tpu_custom_call.1} parent=39 // pred_region
          %s934 = ssub.s32 256, 256
          %935 = vsyncadd %s926, %s934
          %s936 = smul.addr %s21, 2
          %s937 = smul.addr %s936, 128
          %s938 = scalar_lea.hbm %s5, %s937
          %s939 = sshll.u32 %s929, 4
          %s940 = int_to_ptr.vmem [resolvable:$true] %s939
          %945 = dma.vmem_to_hbm [thread:$0]  %s940, 256, %s938, %s926, 128, 128, 8
        $region52: #{tpu_custom_call.1} parent=39 // pred_fallthru
          _
      $region40: #{tpu_custom_call.1} parent=5 // pred_fallthru
        _
      %p946 = scmp.le.s32.totalorder 2, %s16
      // Predicated region
      $region53: #{tpu_custom_call.1} parent=5 // pred_check
        %p947 = pneg %p946
      $region54: #{tpu_custom_call.1} parent=5 // pred_check_branch
        %949 = sbr.rel (%p947) target = $region56
      $region55: #{tpu_custom_call.1} parent=5 // pred_region
        %s950 = ssub.s32 %s16, 2
        // Predicated region
        $region57: #{tpu_custom_call.1} parent=55 // pred_check
          %p951 = pneg %p155
        $region58: #{tpu_custom_call.1} parent=55 // pred_check_branch
          %953 = sbr.rel (%p951) target = $region60
        $region59: #{tpu_custom_call.1} parent=55 // pred_region
          %s954 = sand.u32 %s140, 1
          %s955 = scalar_lea.sflag [#allocation4], %s954
          %s956 = sand.u32 %s140, 1
          %s957 = smul.addr %s956, 16
          %s958 = scalar_lea.vmem [#allocation7], %s957
          %959 = dma.done %s955, 256
        $region60: #{tpu_custom_call.1} parent=55 // pred_fallthru
          _
      $region56: #{tpu_custom_call.1} parent=5 // pred_fallthru
        _
    $region6: #{tpu_custom_call.1} parent=1 // loop_footer
      %s20 = sadd.s32 1, %s16
    $region7: #{tpu_custom_call.1} parent=1 // loop_footer_branch
      %15 = sbr.rel target = $region3
    $region8: #{tpu_custom_call.1} parent=1 // loop_exit
      _
    %960 = vsyncpa [#allocation3], 1
    %s961 = scalar_lea.sflag [#allocation3], 1
    %962 = vsyncpa %s961, 1
    %963 = vsyncpa [#allocation6], 1
    %964 = vsyncpa [#allocation4], 1
    %s965 = scalar_lea.sflag [#allocation4], 1
    %966 = vsyncpa %s965, 1

</llo_original>
